<compile_context>
chip_gen: v7x
topology: tpu7x:2x2x1
jax: 0.10.0
libtpu: 0.0.40
codegen_flags: <defaults>
</compile_context>

<pallas_src>
import functools

import jax
import jax.numpy as jnp
from jax.experimental import pallas as pl
from jax.experimental.pallas import tpu as pltpu


def _round_up(n: int, m: int) -> int:
    return ((n + m - 1) // m) * m


def _gated_sae_kernel(x_ref, wenc_ref, wdec_ref, pre_b_ref, bias_ref,
                      latents_ref, xhat_ref, *scratch, acc_in_output: bool):
    """Grid point (i, l): row tile i x latent tile l.

    x_ref     : (tm, H)   MXU dtype (bf16 by default)
    wenc_ref  : (H, tl)   MXU dtype  (W_enc^T tile)
    wdec_ref  : (tl, H)   MXU dtype  (W_dec^T tile)
    pre_b_ref : (1, H)    f32
    bias_ref  : (3, tl)   f32  rows = [gate_bias - enc_b,
                                       mag_bias - exp(r_mag)*enc_b,
                                       exp(r_mag)]   with enc_b = pre_bias @ W_enc^T
    latents_ref : (tm, tl) output tile
    xhat_ref    : (tm, H)  output tile (resident across the l axis)
    scratch     : optional (tm, H) f32 accumulator (only when x_hat is not f32)
    """
    l = pl.program_id(1)
    n_l = pl.num_programs(1)
    acc_ref = xhat_ref if acc_in_output else scratch[0]

    gate_b = bias_ref[0:1, :]
    mag_b = bias_ref[1:2, :]
    exp_r = bias_ref[2:3, :]

    # Encoder (centering folded into the biases): pre = x @ W_enc^T  (f32 acc).
    pre = jnp.dot(x_ref[...], wenc_ref[...], preferred_element_type=jnp.float32)

    # Gated latents (f32 elementwise math — safe on v5e's non-bf16 VPU).
    gate = (pre + gate_b) > 0.0
    mag = jnp.maximum(exp_r * pre + mag_b, 0.0)
    latents = jnp.where(gate, mag, 0.0)                        # (tm, tl) f32
    latents_ref[...] = latents.astype(latents_ref.dtype)

    # Decoder partial sum over latent tiles: x_hat += latents @ W_dec^T[tile].
    partial = jnp.dot(latents.astype(wdec_ref.dtype), wdec_ref[...],
                      preferred_element_type=jnp.float32)

    @pl.when(l == 0)
    def _():
        acc_ref[...] = partial.astype(acc_ref.dtype)

    @pl.when(l > 0)
    def _():
        acc_ref[...] += partial.astype(acc_ref.dtype)

    @pl.when(l == n_l - 1)
    def _():
        xhat_ref[...] = (acc_ref[...].astype(jnp.float32)
                         + pre_b_ref[...]).astype(xhat_ref.dtype)


@functools.partial(
    jax.jit,
    static_argnames=("tm", "tl", "out_dtype", "latents_dtype", "vmem_limit"))
def _gated_sae_pallas(x2d, wenc_t, wdec_t, pre_b_2d, bias_pack,
                      *, tm, tl, out_dtype, latents_dtype, vmem_limit):
    M, H = x2d.shape
    L = wenc_t.shape[1]
    acc_in_output = jnp.dtype(out_dtype) == jnp.dtype(jnp.float32)

    kernel = functools.partial(_gated_sae_kernel, acc_in_output=acc_in_output)
    scratch_shapes = [] if acc_in_output else [pltpu.VMEM((tm, H), jnp.float32)]

    return pl.pallas_call(
        kernel,
        out_shape=(jax.ShapeDtypeStruct((M, L), latents_dtype),
                   jax.ShapeDtypeStruct((M, H), out_dtype)),
        grid_spec=pltpu.PrefetchScalarGridSpec(
            num_scalar_prefetch=0,
            grid=(M // tm, L // tl),
            in_specs=[
                pl.BlockSpec((tm, H), lambda i, l: (i, 0)),   # x rows tile
                pl.BlockSpec((H, tl), lambda i, l: (0, l)),   # W_enc^T tile
                pl.BlockSpec((tl, H), lambda i, l: (l, 0)),   # W_dec^T tile
                pl.BlockSpec((1, H), lambda i, l: (0, 0)),    # pre_bias
                pl.BlockSpec((3, tl), lambda i, l: (0, l)),   # packed latent biases
            ],
            out_specs=[
                pl.BlockSpec((tm, tl), lambda i, l: (i, l)),  # latents
                pl.BlockSpec((tm, H), lambda i, l: (i, 0)),   # x_hat (resident over l)
            ],
            scratch_shapes=scratch_shapes,
        ),
        compiler_params=pltpu.CompilerParams(
            dimension_semantics=("parallel", "arbitrary"),
            vmem_limit_bytes=vmem_limit),
    )(x2d, wenc_t, wdec_t, pre_b_2d, bias_pack)


def gated_sae_forward(x, w_enc, w_dec, pre_bias, gate_bias, mag_bias, r_mag,
                      *, tm=512, tl=512, mxu_dtype=jnp.bfloat16,
                      latents_dtype=None, vmem_limit_bytes=None):
    """
    x:        [B, S, H]
    w_enc:    [L, H]   (nn.Linear(hidden, latent).weight)
    w_dec:    [H, L]   (nn.Linear(latent, hidden).weight)
    biases:   pre_bias [H], gate_bias/mag_bias/r_mag [L]
    returns:  (latents [B, S, L], x_hat [B, S, H])
    """
    B, S, H = x.shape
    L = w_enc.shape[0]
    M = B * S
    out_dtype = jnp.dtype(x.dtype)
    latents_dtype = out_dtype if latents_dtype is None else jnp.dtype(latents_dtype)
    mxu_dtype = jnp.dtype(mxu_dtype)

    # ---- tile selection + pad-and-slice (never degrade to degenerate tiles).
    row_align = 8 if mxu_dtype == jnp.dtype(jnp.float32) else 16
    tm_eff = min(int(tm), _round_up(M, row_align))
    tm_eff = max(row_align, (tm_eff // row_align) * row_align)
    m_pad = _round_up(M, tm_eff)

    tl_eff = min(int(tl), _round_up(L, 128))
    tl_eff = max(128, (tl_eff // 128) * 128)
    l_pad = _round_up(L, tl_eff)

    # ---- MXU operands (bf16 by default), padded. Padded latent columns are inert
    # (zero weights + zero biases -> gate closed -> zero latent -> zero x_hat term).
    x2d = jnp.pad(x.reshape(M, H).astype(mxu_dtype), ((0, m_pad - M), (0, 0)))
    wenc_t = jnp.pad(w_enc.T.astype(mxu_dtype), ((0, 0), (0, l_pad - L)))   # (H, Lp)
    wdec_t = jnp.pad(w_dec.T.astype(mxu_dtype), ((0, l_pad - L), (0, 0)))   # (Lp, H)

    # ---- hoisted f32 parameter prep. Centering folded into the latent biases:
    #   pre_acts = x@W_enc^T - enc_b,  enc_b = pre_bias @ W_enc^T  (kept in f32)
    #   gate term: x@W + (gate_bias - enc_b)
    #   mag  term: exp(r)*x@W + (mag_bias - exp(r)*enc_b)
    pre_b_f32 = pre_bias.astype(jnp.float32)
    enc_b = jnp.dot(w_enc, pre_bias.astype(w_enc.dtype),
                    preferred_element_type=jnp.float32).astype(jnp.float32)   # (L,)
    exp_r = jnp.exp(r_mag.astype(jnp.float32))
    gate_b = gate_bias.astype(jnp.float32) - enc_b
    mag_b = mag_bias.astype(jnp.float32) - exp_r * enc_b
    bias_pack = jnp.pad(jnp.stack([gate_b, mag_b, exp_r], axis=0),
                        ((0, 0), (0, l_pad - L)))                             # (3, Lp)
    pre_b_2d = pre_b_f32.reshape(1, H)

    # ---- VMEM budget -> scoped limit (double-buffered tiles + accumulator).
    if vmem_limit_bytes is None:
        mb = mxu_dtype.itemsize
        budget = (2 * tm_eff * H * mb                 # x tile
                  + 2 * H * tl_eff * mb               # W_enc^T tile
                  + 2 * tl_eff * H * mb               # W_dec^T tile
                  + 2 * H * 4 + 2 * 3 * tl_eff * 4    # pre_bias + bias pack
                  + 2 * tm_eff * tl_eff * latents_dtype.itemsize
                  + 2 * tm_eff * H * out_dtype.itemsize)
        if out_dtype != jnp.dtype(jnp.float32):
            budget += tm_eff * H * 4                  # f32 x_hat accumulator scratch
        # Cap below the v7x 64 MiB/TC physical VMEM; v5e/v6e users may pass a
        # larger limit (up to ~100 MiB) together with bigger tm.
        vmem_limit_bytes = min(max(int(budget * 1.4) + (2 << 20), 32 << 20), 56 << 20)

    latents2d, xhat2d = _gated_sae_pallas(
        x2d, wenc_t, wdec_t, pre_b_2d, bias_pack,
        tm=tm_eff, tl=tl_eff, out_dtype=out_dtype, latents_dtype=latents_dtype,
        vmem_limit=int(vmem_limit_bytes))

    latents = latents2d[:M, :L].reshape(B, S, L)
    x_hat = xhat2d[:M, :].reshape(B, S, H)
    return latents, x_hat


def _true_reference(x, w_enc, w_dec, pre_bias, gate_bias, mag_bias, r_mag):
    """Pure-JAX reference mirroring the PyTorch module exactly (f32 math)."""
    pre_acts = jnp.einsum("bsh,lh->bsl", x - pre_bias, w_enc,
                          precision=jax.lax.Precision.HIGHEST)
    f_gate = (pre_acts + gate_bias > 0).astype(x.dtype)
    f_mag = jax.nn.relu(jnp.exp(r_mag) * pre_acts + mag_bias)
    latents = f_gate * f_mag
    x_hat = jnp.einsum("bsl,hl->bsh", latents, w_dec,
                       precision=jax.lax.Precision.HIGHEST) + pre_bias
    return latents, x_hat


def _mirrored_latents(x, w_enc, pre_bias, gate_bias, mag_bias, r_mag, mxu_dtype):
    """Reference using the same MXU operand rounding + bias fold as the kernel."""
    pre = jnp.einsum("bsh,lh->bsl", x.astype(mxu_dtype), w_enc.astype(mxu_dtype),
                     preferred_element_type=jnp.float32)
    enc_b = jnp.dot(w_enc, pre_bias.astype(w_enc.dtype),
                    preferred_element_type=jnp.float32).astype(jnp.float32)
    exp_r = jnp.exp(r_mag.astype(jnp.float32))
    gate_b = gate_bias.astype(jnp.float32) - enc_b
    mag_b = mag_bias.astype(jnp.float32) - exp_r * enc_b
    pi_gate = pre + gate_b
    latents = jnp.where(pi_gate > 0.0, jnp.maximum(exp_r * pre + mag_b, 0.0), 0.0)
    return latents, pi_gate


if __name__ == "__main__":
    # Small shapes consistent with the module's forward: [batch, seq, hidden].
    B, S, H, L = 2, 8, 32, 64
    key = jax.random.PRNGKey(0)
    k_x, k_enc, k_pre, k_gate, k_mag, k_rmag = jax.random.split(key, 6)

    x = jax.random.normal(k_x, (B, S, H), dtype=jnp.float32)
    # Module-consistent parameter shapes: encoder.weight [L, H]; decoder.weight [H, L].
    w_enc = jax.random.normal(k_enc, (L, H), dtype=jnp.float32) * (1.0 / H ** 0.5)
    w_dec = w_enc.T
    pre_bias = jax.random.normal(k_pre, (H,), dtype=jnp.float32) * 0.1
    gate_bias = jax.random.normal(k_gate, (L,), dtype=jnp.float32) * 0.1
    mag_bias = jax.random.normal(k_mag, (L,), dtype=jnp.float32) * 0.1
    r_mag = jax.random.normal(k_rmag, (L,), dtype=jnp.float32) * 0.1

    latents, x_hat = gated_sae_forward(x, w_enc, w_dec, pre_bias, gate_bias,
                                       mag_bias, r_mag)
    jax.block_until_ready((latents, x_hat))
    assert latents.shape == (B, S, L) and latents.dtype == x.dtype
    assert x_hat.shape == (B, S, H) and x_hat.dtype == x.dtype

    # (1) Encoder + gating: compare against a reference with the same bf16 operand
    #     rounding and bias fold; mask elements sitting exactly on the gate threshold.
    lat_m, pi_gate_m = _mirrored_latents(x, w_enc, pre_bias, gate_bias, mag_bias,
                                         r_mag, jnp.bfloat16)
    conf = jnp.abs(pi_gate_m) > 1e-3
    assert jnp.allclose(jnp.where(conf, latents, 0.0), jnp.where(conf, lat_m, 0.0),
                        atol=2e-3, rtol=2e-3)

    # (2) Decoder: reconstruct x_hat from the kernel's own latents (gating-independent).
    xhat_from_lat = jnp.einsum(
        "bsl,lh->bsh", latents.astype(jnp.bfloat16), w_dec.T.astype(jnp.bfloat16),
        preferred_element_type=jnp.float32) + pre_bias
    assert jnp.allclose(x_hat, xhat_from_lat, atol=2e-3, rtol=2e-3)

    # (3) Loose end-to-end sanity vs the exact f32 PyTorch formula (bf16 MXU rounding
    #     may flip near-threshold gates, so compare mean error only).
    lat_ref, xhat_ref = _true_reference(x, w_enc, w_dec, pre_bias, gate_bias,
                                        mag_bias, r_mag)
    assert float(jnp.mean(jnp.abs(latents - lat_ref))) < 2e-2
    assert float(jnp.mean(jnp.abs(x_hat - xhat_ref))) < 5e-2

    print("KERNEL_OK")
</pallas_src>

<mosaic_0001>
module attributes {stable_mosaic.version = 11 : i64} {
  func.func @_gated_sae_kernel(%arg0: i32, %arg1: i32, %arg2: memref<16x32xbf16, #tpu.memory_space<vmem>>, %arg3: memref<32x128xbf16, #tpu.memory_space<vmem>>, %arg4: memref<128x32xbf16, #tpu.memory_space<vmem>>, %arg5: memref<1x32xf32, #tpu.memory_space<vmem>>, %arg6: memref<3x128xf32, #tpu.memory_space<vmem>>, %arg7: memref<16x128xf32, #tpu.memory_space<vmem>>, %arg8: memref<16x32xf32, #tpu.memory_space<vmem>>) attributes {dimension_semantics = [#tpu.dimension_semantics<parallel>, #tpu.dimension_semantics<arbitrary>], iteration_bounds = array<i64: 1, 1>, scalar_prefetch = 0 : i64, scratch_operands = 0 : i64, tpu.core_type = #tpu.core_type<tc>, window_params = [{transform_indices = @transform_0, window_bounds = array<i64: 16, 32>}, {transform_indices = @transform_1, window_bounds = array<i64: 32, 128>}, {transform_indices = @transform_2, window_bounds = array<i64: 128, 32>}, {pipeline_mode = #tpu.pipeline_mode<synchronous>, transform_indices = @transform_3, window_bounds = array<i64: 1, 32>}, {transform_indices = @transform_4, window_bounds = array<i64: 3, 128>}, {transform_indices = @transform_5, window_bounds = array<i64: 16, 128>}, {transform_indices = @transform_6, window_bounds = array<i64: 16, 32>}]} {
    %c0 = arith.constant 0 : index
    %c0_0 = arith.constant 0 : index
    %0 = vector.load %arg6[%c0, %c0_0] : memref<3x128xf32, #tpu.memory_space<vmem>>, vector<1x128xf32>
    %c1 = arith.constant 1 : index
    %c0_1 = arith.constant 0 : index
    %1 = vector.load %arg6[%c1, %c0_1] : memref<3x128xf32, #tpu.memory_space<vmem>>, vector<1x128xf32>
    %c2 = arith.constant 2 : index
    %c0_2 = arith.constant 0 : index
    %2 = vector.load %arg6[%c2, %c0_2] : memref<3x128xf32, #tpu.memory_space<vmem>>, vector<1x128xf32>
    %c0_3 = arith.constant 0 : index
    %c0_4 = arith.constant 0 : index
    %3 = vector.load %arg2[%c0_3, %c0_4] : memref<16x32xbf16, #tpu.memory_space<vmem>>, vector<16x32xbf16>
    %c0_5 = arith.constant 0 : index
    %c0_6 = arith.constant 0 : index
    %4 = vector.load %arg3[%c0_5, %c0_6] : memref<32x128xbf16, #tpu.memory_space<vmem>>, vector<32x128xbf16>
    %cst = arith.constant dense<0.000000e+00> : vector<16x128xf32>
    %5 = tpu.matmul %3, %4, %cst {dimension_numbers = #tpu.dot_dimension_numbers<[1], [0], [0], [1], [0, 0, 1, 1], [], []>} : vector<16x32xbf16>, vector<32x128xbf16>, vector<16x128xf32> -> vector<16x128xf32>
    %6 = vector.broadcast %0 : vector<1x128xf32> to vector<16x128xf32>
    %7 = arith.addf %5, %6 : vector<16x128xf32>
    %cst_7 = arith.constant 0.000000e+00 : f32
    %8 = vector.broadcast %cst_7 : f32 to vector<16x128xf32>
    %9 = arith.cmpf ogt, %7, %8 : vector<16x128xf32>
    %10 = vector.broadcast %2 : vector<1x128xf32> to vector<16x128xf32>
    %11 = arith.mulf %10, %5 : vector<16x128xf32>
    %12 = vector.broadcast %1 : vector<1x128xf32> to vector<16x128xf32>
    %13 = arith.addf %11, %12 : vector<16x128xf32>
    %cst_8 = arith.constant 0.000000e+00 : f32
    %14 = vector.broadcast %cst_8 : f32 to vector<16x128xf32>
    %15 = arith.maximumf %13, %14 : vector<16x128xf32>
    %cst_9 = arith.constant 0.000000e+00 : f32
    %16 = vector.broadcast %cst_9 : f32 to vector<16x128xf32>
    %17 = arith.select %9, %15, %16 : vector<16x128xi1>, vector<16x128xf32>
    %c0_10 = arith.constant 0 : index
    %c0_11 = arith.constant 0 : index
    %18 = vector.load %arg7[%c0_10, %c0_11] : memref<16x128xf32, #tpu.memory_space<vmem>>, vector<16x128xf32>
    tpu.vector_store %arg7[%c0_10, %c0_11], %17 {strides = array<i32>} : memref<16x128xf32, #tpu.memory_space<vmem>>, vector<16x128xf32>,
    %19 = arith.truncf %17 : vector<16x128xf32> to vector<16x128xbf16>
    %c0_12 = arith.constant 0 : index
    %c0_13 = arith.constant 0 : index
    %20 = vector.load %arg4[%c0_12, %c0_13] : memref<128x32xbf16, #tpu.memory_space<vmem>>, vector<128x32xbf16>
    %cst_14 = arith.constant dense<0.000000e+00> : vector<16x32xf32>
    %21 = tpu.matmul %19, %20, %cst_14 {dimension_numbers = #tpu.dot_dimension_numbers<[1], [0], [0], [1], [0, 0, 1, 1], [], []>} : vector<16x128xbf16>, vector<128x32xbf16>, vector<16x32xf32> -> vector<16x32xf32>
    %c0_i32 = arith.constant 0 : i32
    %22 = arith.cmpi eq, %arg1, %c0_i32 : i32
    %23 = arith.extui %22 : i1 to i32
    %c0_i32_15 = arith.constant 0 : i32
    %24 = arith.cmpi ne, %23, %c0_i32_15 : i32
    scf.if %24 {
      %c0_20 = arith.constant 0 : index
      %c0_21 = arith.constant 0 : index
      %31 = vector.load %arg8[%c0_20, %c0_21] : memref<16x32xf32, #tpu.memory_space<vmem>>, vector<16x32xf32>
      tpu.vector_store %arg8[%c0_20, %c0_21], %21 {strides = array<i32>} : memref<16x32xf32, #tpu.memory_space<vmem>>, vector<16x32xf32>,
    } else {
    }
    %c0_i32_16 = arith.constant 0 : i32
    %25 = arith.cmpi sgt, %arg1, %c0_i32_16 : i32
    %26 = arith.extui %25 : i1 to i32
    %c0_i32_17 = arith.constant 0 : i32
    %27 = arith.cmpi ne, %26, %c0_i32_17 : i32
    scf.if %27 {
      %c0_20 = arith.constant 0 : index
      %c0_21 = arith.constant 0 : index
      %31 = vector.load %arg8[%c0_20, %c0_21] : memref<16x32xf32, #tpu.memory_space<vmem>>, vector<16x32xf32>
      %32 = arith.addf %31, %21 : vector<16x32xf32>
      %c0_22 = arith.constant 0 : index
      %c0_23 = arith.constant 0 : index
      %33 = vector.load %arg8[%c0_22, %c0_23] : memref<16x32xf32, #tpu.memory_space<vmem>>, vector<16x32xf32>
      tpu.vector_store %arg8[%c0_22, %c0_23], %32 {strides = array<i32>} : memref<16x32xf32, #tpu.memory_space<vmem>>, vector<16x32xf32>,
    } else {
    }
    %c0_i32_18 = arith.constant 0 : i32
    %28 = arith.cmpi eq, %arg1, %c0_i32_18 : i32
    %29 = arith.extui %28 : i1 to i32
    %c0_i32_19 = arith.constant 0 : i32
    %30 = arith.cmpi ne, %29, %c0_i32_19 : i32
    scf.if %30 {
      %c0_20 = arith.constant 0 : index
      %c0_21 = arith.constant 0 : index
      %31 = vector.load %arg8[%c0_20, %c0_21] : memref<16x32xf32, #tpu.memory_space<vmem>>, vector<16x32xf32>
      %c0_22 = arith.constant 0 : index
      %c0_23 = arith.constant 0 : index
      %32 = vector.load %arg5[%c0_22, %c0_23] : memref<1x32xf32, #tpu.memory_space<vmem>>, vector<1x32xf32>
      %33 = vector.broadcast %32 : vector<1x32xf32> to vector<16x32xf32>
      %34 = arith.addf %31, %33 : vector<16x32xf32>
      %c0_24 = arith.constant 0 : index
      %c0_25 = arith.constant 0 : index
      %35 = vector.load %arg8[%c0_24, %c0_25] : memref<16x32xf32, #tpu.memory_space<vmem>>, vector<16x32xf32>
      tpu.vector_store %arg8[%c0_24, %c0_25], %34 {strides = array<i32>} : memref<16x32xf32, #tpu.memory_space<vmem>>, vector<16x32xf32>,
    } else {
    }
    return
  }
  func.func @transform_0(%arg0: i32, %arg1: i32) -> (i32, i32) {
    %c0_i32 = arith.constant 0 : i32
    %c0_i32_0 = arith.constant 0 : i32
    return %arg0, %c0_i32 : i32, i32
  }
  func.func @transform_1(%arg0: i32, %arg1: i32) -> (i32, i32) {
    %c0_i32 = arith.constant 0 : i32
    %c0_i32_0 = arith.constant 0 : i32
    return %c0_i32, %arg1 : i32, i32
  }
  func.func @transform_2(%arg0: i32, %arg1: i32) -> (i32, i32) {
    %c0_i32 = arith.constant 0 : i32
    %c0_i32_0 = arith.constant 0 : i32
    return %arg1, %c0_i32 : i32, i32
  }
  func.func @transform_3(%arg0: i32, %arg1: i32) -> (i32, i32) {
    %c0_i32 = arith.constant 0 : i32
    %c0_i32_0 = arith.constant 0 : i32
    %c0_i32_1 = arith.constant 0 : i32
    return %c0_i32, %c0_i32_0 : i32, i32
  }
  func.func @transform_4(%arg0: i32, %arg1: i32) -> (i32, i32) {
    %c0_i32 = arith.constant 0 : i32
    %c0_i32_0 = arith.constant 0 : i32
    return %c0_i32, %arg1 : i32, i32
  }
  func.func @transform_5(%arg0: i32, %arg1: i32) -> (i32, i32) {
    %c0_i32 = arith.constant 0 : i32
    return %arg0, %arg1 : i32, i32
  }
  func.func @transform_6(%arg0: i32, %arg1: i32) -> (i32, i32) {
    %c0_i32 = arith.constant 0 : i32
    %c0_i32_0 = arith.constant 0 : i32
    return %arg0, %c0_i32 : i32, i32
  }
}

</mosaic_0001>

<llo_original>
// kernel: _gated_sae_pallas.1
$region0: #{_gated_sae_pallas.1}
  #allocation0 [shape = 'u32[]', space=smem, size = 0x4, offset = 0x4, fixed_abs, tag = 'smem constant byte address 0x4 - core index']
  #allocation1 [shape = 'u32[144,128]{1,0:T(1,128)}', space=vmem, size = 0x12000, scoped, tag = 'internal scratch']
  %s0 = inlined_call_operand.vmem [shape: bf16[16,32], index: 0, kind: input, shape index: {}]
  %s1 = inlined_call_operand.vmem [shape: bf16[32,128], index: 1, kind: input, shape index: {}]
  %s2 = inlined_call_operand.vmem [shape: bf16[128,32], index: 2, kind: input, shape index: {}]
  %s3 = inlined_call_operand.vmem [shape: f32[1,32], index: 3, kind: input, shape index: {}]
  %s4 = inlined_call_operand.vmem [shape: f32[3,128], index: 4, kind: input, shape index: {}]
  %s5 = inlined_call_operand.hbm [shape: f32[16,128], index: 5, kind: output, shape index: {0}]
  %s6 = inlined_call_operand.hbm [shape: f32[16,32], index: 6, kind: output, shape index: {1}]
  %7 = xla_tuple %s5, %s6
  %s8 = sld [smem:[#allocation0]]
  $region50: #{_gated_sae_pallas.1} parent=0
    _
  %s10 = ssub.s32 1, %s8
  %s11 = scalar_select 0, %s10, %s8
  $region1: #{_gated_sae_pallas.1} parent=0
    #allocation2 [shape = 'u8[8192]{0}', space=vmem, size = 0x2000, scoped, tag = 'output window, operand 0, single buffered']
    #allocation3 [shape = 's32[1]{0}', space=sflag, size = 0x4, scoped, tag = 'scoped memory for _gated_sae_pallas.1']
    #allocation4 [shape = 'u8[8192]{0}', space=vmem, size = 0x2000, scoped, tag = 'output window, operand 1, single buffered']
    #allocation5 [shape = 's32[1]{0}', space=sflag, size = 0x4, scoped, tag = 'scoped memory for _gated_sae_pallas.1']
    %12 = vsyncpa [#allocation3], 0
    %13 = vsyncpa [#allocation5], 0
    // Predicated region
    $region2: #{_gated_sae_pallas.1} parent=1 // pred_check
      _
    $region3: #{_gated_sae_pallas.1} parent=1 // pred_check_branch
      %15 = sbr.rel (0) target = $region5
    $region4: #{_gated_sae_pallas.1} parent=1 // pred_region
      _
    $region5: #{_gated_sae_pallas.1} parent=1 // pred_fallthru
      _
    // Predicated region
    $region6: #{_gated_sae_pallas.1} parent=1 // pred_check
      _
    $region7: #{_gated_sae_pallas.1} parent=1 // pred_check_branch
      %17 = sbr.rel (0) target = $region9
    $region8: #{_gated_sae_pallas.1} parent=1 // pred_region
      _
    $region9: #{_gated_sae_pallas.1} parent=1 // pred_fallthru
      _
    // Predicated region
    $region10: #{_gated_sae_pallas.1} parent=1 // pred_check
      _
    $region11: #{_gated_sae_pallas.1} parent=1 // pred_check_branch
      %19 = sbr.rel (0) target = $region13
    $region12: #{_gated_sae_pallas.1} parent=1 // pred_region
      _
    $region13: #{_gated_sae_pallas.1} parent=1 // pred_fallthru
      _
    // Predicated region
    $region14: #{_gated_sae_pallas.1} parent=1 // pred_check
      _
    $region15: #{_gated_sae_pallas.1} parent=1 // pred_check_branch
      %21 = sbr.rel (0) target = $region17
    $region16: #{_gated_sae_pallas.1} parent=1 // pred_region
      _
    $region17: #{_gated_sae_pallas.1} parent=1 // pred_fallthru
      _
    // Predicated region
    $region18: #{_gated_sae_pallas.1} parent=1 // pred_check
      _
    $region19: #{_gated_sae_pallas.1} parent=1 // pred_check_branch
      %23 = sbr.rel (0) target = $region21
    $region20: #{_gated_sae_pallas.1} parent=1 // pred_region
      _
    $region21: #{_gated_sae_pallas.1} parent=1 // pred_fallthru
      _
    %v25 = vld [vmem:[%s4] sm:$0x1]
    %v26 = vld [vmem:[%s4 + $0x1] sm:$0x1]
    %v27 = vld [vmem:[%s4 + $0x2] sm:$0x1]
    %v28 = vld [vmem:[%s0] sm:$0xf]
    %v29 = vld [vmem:[%s0 + $0x4] sm:$0xf]
    %v30 = vld [vmem:[%s1] sm:$0xf]
    %v31 = vld [vmem:[%s1 + $0x4] sm:$0xf]
    %v32 = vld [vmem:[%s1 + $0x8] sm:$0xf]
    %v33 = vld [vmem:[%s1 + $0xc] sm:$0xf]
    %v36 = vunpack.c.l.b16 %v28
    %v37 = vunpack.c.l.b16 %v29
    %v38 = vpack.c.b16 %v37, %v36
    %v43 = vunpack.c.l.b16 %v30
    %v44 = vunpack.c.l.b16 %v31
    %v45 = vunpack.c.l.b16 %v32
    %v46 = vunpack.c.l.b16 %v33
    %v47 = vpack.c.b16 %v44, %v43
    %v48 = vpack.c.b16 %v46, %v45
    %vm51 = vcmask 261120
    %v53 = vsel %vm51, %v38, 0
    %55 = vmatprep.subr.bf16.mxu0 0
    %56 = vmatpush1.bf16.msra.mxu0 %v47
    %57 = vmatprep.subr.bf16.mxu0 0
    %58 = vmatpush1.bf16.msra.mxu0 %v48
    %59 = vmatprep.subr.bf16.mxu0 0
    %60 = vmatpush1.bf16.msra.mxu0 0
    %61 = vmatprep.subr.bf16.mxu0 0
    %62 = vmatpush1.bf16.msra.mxu0 0
    %63 = vmatprep.subr.bf16.mxu0 0
    %64 = vmatpush1.bf16.msra.mxu0 0
    %65 = vmatprep.subr.bf16.mxu0 0
    %66 = vmatpush1.bf16.msra.mxu0 0
    %67 = vmatprep.subr.bf16.mxu0 0
    %68 = vmatpush1.bf16.msra.mxu0 0
    %69 = vmatprep.subr.bf16.mxu0 0
    %70 = vmatpush1.bf16.msra.mxu0 0
    %71 = vmatprep.subr.bf16.mxu0 0
    %72 = vmatpush1.bf16.msra.mxu0 0
    %73 = vmatprep.subr.bf16.mxu0 0
    %74 = vmatpush1.bf16.msra.mxu0 0
    %75 = vmatprep.subr.bf16.mxu0 0
    %76 = vmatpush1.bf16.msra.mxu0 0
    %77 = vmatprep.subr.bf16.mxu0 0
    %78 = vmatpush1.bf16.msra.mxu0 0
    %79 = vmatprep.subr.bf16.mxu0 0
    %80 = vmatpush1.bf16.msra.mxu0 0
    %81 = vmatprep.subr.bf16.mxu0 0
    %82 = vmatpush1.bf16.msra.mxu0 0
    %83 = vmatprep.subr.bf16.mxu0 0
    %84 = vmatpush1.bf16.msra.mxu0 0
    %85 = vmatprep.subr.bf16.mxu0 0
    %86 = vmatpush1.bf16.msra.mxu0 0
    %87 = vmatprep.mubr.bf16.mxu0 0
    %88 = vmatmul.mubr.bf16.gmra.mrb[0].mxu0 %v53
    %v89 = vpop.f32.mrb[0].mxu0
    %v90 = vadd.f32 0.0, %v89
    %v91 = vpop.f32.mrb[0].mxu0
    %v92 = vpop.f32.mrb[0].mxu0
    %v93 = vadd.f32 0.0, %v92
    %v94 = vpop.f32.mrb[0].mxu0
    %95 = vdwg.mxu0
    %v96 = vlaneseq
    %v97 = vshrl.u32 %v96, 7
    %v98 = vsub.s32 0, %v97
    %v99 = vrot.slane %v25, %v98
    %v100 = vadd.f32 %v90, %v99
    %v101 = vadd.f32 %v93, %v99
    %vm102 = vcmp.gt.f32.partialorder %v100, 0.0
    %vm103 = vcmp.gt.f32.partialorder %v101, 0.0
    %v104 = vlaneseq
    %v105 = vshrl.u32 %v104, 7
    %v106 = vsub.s32 0, %v105
    %v107 = vrot.slane %v27, %v106
    %v108 = vmul.f32 %v107, %v90
    %v109 = vmul.f32 %v107, %v93
    %v110 = vlaneseq
    %v111 = vshrl.u32 %v110, 7
    %v112 = vsub.s32 0, %v111
    %v113 = vrot.slane %v26, %v112
    %v114 = vadd.f32 %v108, %v113
    %v115 = vadd.f32 %v109, %v113
    %v116 = vmax.f32 %v114, 0.0
    %v117 = vmax.f32 %v115, 0.0
    %v118 = vsel %vm102, %v116, 0.0
    %v119 = vsel %vm103, %v117, 0.0
    %120 = vst [vmem:[#allocation2] sm:$0xff] %v118
    %121 = vst [vmem:[#allocation2 + $0x8] sm:$0xff] %v119
    %v122 = vpack.c.bf16 %v119, %v118
    %v123 = vld [vmem:[%s2] sm:$0xf]
    %v124 = vld [vmem:[%s2 + $0x4] sm:$0xf]
    %v125 = vld [vmem:[%s2 + $0x8] sm:$0xf]
    %v126 = vld [vmem:[%s2 + $0xc] sm:$0xf]
    %v127 = vld [vmem:[%s2 + $0x10] sm:$0xf]
    %v128 = vld [vmem:[%s2 + $0x14] sm:$0xf]
    %v129 = vld [vmem:[%s2 + $0x18] sm:$0xf]
    %v130 = vld [vmem:[%s2 + $0x1c] sm:$0xf]
    %v131 = vld [vmem:[%s2 + $0x20] sm:$0xf]
    %v132 = vld [vmem:[%s2 + $0x24] sm:$0xf]
    %v133 = vld [vmem:[%s2 + $0x28] sm:$0xf]
    %v134 = vld [vmem:[%s2 + $0x2c] sm:$0xf]
    %v135 = vld [vmem:[%s2 + $0x30] sm:$0xf]
    %v136 = vld [vmem:[%s2 + $0x34] sm:$0xf]
    %v137 = vld [vmem:[%s2 + $0x38] sm:$0xf]
    %v138 = vld [vmem:[%s2 + $0x3c] sm:$0xf]
    %v155 = vunpack.c.l.b16 %v123
    %v156 = vunpack.c.l.b16 %v124
    %v157 = vunpack.c.l.b16 %v125
    %v158 = vunpack.c.l.b16 %v126
    %v159 = vunpack.c.l.b16 %v127
    %v160 = vunpack.c.l.b16 %v128
    %v161 = vunpack.c.l.b16 %v129
    %v162 = vunpack.c.l.b16 %v130
    %v163 = vunpack.c.l.b16 %v131
    %v164 = vunpack.c.l.b16 %v132
    %v165 = vunpack.c.l.b16 %v133
    %v166 = vunpack.c.l.b16 %v134
    %v167 = vunpack.c.l.b16 %v135
    %v168 = vunpack.c.l.b16 %v136
    %v169 = vunpack.c.l.b16 %v137
    %v170 = vunpack.c.l.b16 %v138
    %v171 = vpack.c.b16 %v156, %v155
    %v172 = vpack.c.b16 %v158, %v157
    %v173 = vpack.c.b16 %v160, %v159
    %v174 = vpack.c.b16 %v162, %v161
    %v175 = vpack.c.b16 %v164, %v163
    %v176 = vpack.c.b16 %v166, %v165
    %v177 = vpack.c.b16 %v168, %v167
    %v178 = vpack.c.b16 %v170, %v169
    %187 = vmatprep.subr.bf16.mxu0 0
    %188 = vmatpush1.bf16.msra.mxu0 %v171
    %189 = vmatprep.subr.bf16.mxu0 0
    %190 = vmatpush1.bf16.msra.mxu0 %v172
    %191 = vmatprep.subr.bf16.mxu0 0
    %192 = vmatpush1.bf16.msra.mxu0 %v173
    %193 = vmatprep.subr.bf16.mxu0 0
    %194 = vmatpush1.bf16.msra.mxu0 %v174
    %195 = vmatprep.subr.bf16.mxu0 0
    %196 = vmatpush1.bf16.msra.mxu0 %v175
    %197 = vmatprep.subr.bf16.mxu0 0
    %198 = vmatpush1.bf16.msra.mxu0 %v176
    %199 = vmatprep.subr.bf16.mxu0 0
    %200 = vmatpush1.bf16.msra.mxu0 %v177
    %201 = vmatprep.subr.bf16.mxu0 0
    %202 = vmatpush1.bf16.msra.mxu0 %v178
    %203 = vmatprep.subr.bf16.mxu0 0
    %204 = vmatpush1.bf16.msra.mxu0 0
    %205 = vmatprep.subr.bf16.mxu0 0
    %206 = vmatpush1.bf16.msra.mxu0 0
    %207 = vmatprep.subr.bf16.mxu0 0
    %208 = vmatpush1.bf16.msra.mxu0 0
    %209 = vmatprep.subr.bf16.mxu0 0
    %210 = vmatpush1.bf16.msra.mxu0 0
    %211 = vmatprep.subr.bf16.mxu0 0
    %212 = vmatpush1.bf16.msra.mxu0 0
    %213 = vmatprep.subr.bf16.mxu0 0
    %214 = vmatpush1.bf16.msra.mxu0 0
    %215 = vmatprep.subr.bf16.mxu0 0
    %216 = vmatpush1.bf16.msra.mxu0 0
    %217 = vmatprep.subr.bf16.mxu0 0
    %218 = vmatpush1.bf16.msra.mxu0 0
    %219 = vmatprep.mubr.bf16.mxu0 0
    %220 = vmatmul.mubr.bf16.gmra.mrb[0].mxu0 %v122
    %v221 = vpop.f32.mrb[0].mxu0
    %v222 = vadd.f32 0.0, %v221
    %v223 = vpop.f32.mrb[0].mxu0
    %v224 = vpop.f32.mrb[0].mxu0
    %v225 = vadd.f32 0.0, %v224
    %v226 = vpop.f32.mrb[0].mxu0
    %227 = vdwg.mxu0
    %p228 = scmp.eq.s32.totalorder 0, 0
    // Predicated region
    $region22: #{_gated_sae_pallas.1} parent=1 // pred_check
      %p229 = pneg %p228
    $region23: #{_gated_sae_pallas.1} parent=1 // pred_check_branch
      %231 = sbr.rel (%p229) target = $region25
    $region24: #{_gated_sae_pallas.1} parent=1 // pred_region
      %232 = vst.msk [vmem:[#allocation4] sm:$0xff] %vm51, %v222
      %233 = vst.msk [vmem:[#allocation4 + $0x8] sm:$0xff] %vm51, %v225
    $region25: #{_gated_sae_pallas.1} parent=1 // pred_fallthru
      _
    %p234 = scmp.gt.s32.totalorder 0, 0
    // Predicated region
    $region26: #{_gated_sae_pallas.1} parent=1 // pred_check
      %p235 = pneg %p234
    $region27: #{_gated_sae_pallas.1} parent=1 // pred_check_branch
      %237 = sbr.rel (%p235) target = $region29
    $region28: #{_gated_sae_pallas.1} parent=1 // pred_region
      %v238 = vld [vmem:[#allocation4] sm:$0xff]
      %v239 = vld [vmem:[#allocation4 + $0x8] sm:$0xff]
      %v240 = vadd.f32 %v238, %v222
      %v241 = vadd.f32 %v239, %v225
      %242 = vst.msk [vmem:[#allocation4] sm:$0xff] %vm51, %v240
      %243 = vst.msk [vmem:[#allocation4 + $0x8] sm:$0xff] %vm51, %v241
    $region29: #{_gated_sae_pallas.1} parent=1 // pred_fallthru
      _
    // Predicated region
    $region30: #{_gated_sae_pallas.1} parent=1 // pred_check
      %p244 = pneg %p228
    $region31: #{_gated_sae_pallas.1} parent=1 // pred_check_branch
      %246 = sbr.rel (%p244) target = $region33
    $region32: #{_gated_sae_pallas.1} parent=1 // pred_region
      %v247 = vld [vmem:[#allocation4] sm:$0xff]
      %v248 = vld [vmem:[#allocation4 + $0x8] sm:$0xff]
      %v249 = vld [vmem:[%s3] sm:$0x1]
      %v251 = vlaneseq
      %v252 = vshrl.u32 %v251, 7
      %v253 = vsub.s32 0, %v252
      %v254 = vrot.slane %v249, %v253
      %v256 = vadd.f32 %v247, %v254
      %v257 = vadd.f32 %v248, %v254
      %258 = vst.msk [vmem:[#allocation4] sm:$0xff] %vm51, %v256
      %259 = vst.msk [vmem:[#allocation4 + $0x8] sm:$0xff] %vm51, %v257
    $region33: #{_gated_sae_pallas.1} parent=1 // pred_fallthru
      _
    // Predicated region
    $region34: #{_gated_sae_pallas.1} parent=1 // pred_check
      _
    $region35: #{_gated_sae_pallas.1} parent=1 // pred_check_branch
      %261 = sbr.rel (0) target = $region37
    $region36: #{_gated_sae_pallas.1} parent=1 // pred_region
      %s263 = ssub.s32 256, 256
      %264 = vsyncadd [#allocation3], %s263
      %s265 = sshll.u32 [#allocation2], 4
      %s266 = int_to_ptr.vmem [resolvable:$true] %s265
      %271 = dma.vmem_to_hbm [thread:$0]  %s266, 256, %s5, [#allocation3], 128, 128, 8
    $region37: #{_gated_sae_pallas.1} parent=1 // pred_fallthru
      _
    // Predicated region
    $region38: #{_gated_sae_pallas.1} parent=1 // pred_check
      _
    $region39: #{_gated_sae_pallas.1} parent=1 // pred_check_branch
      %273 = sbr.rel (0) target = $region41
    $region40: #{_gated_sae_pallas.1} parent=1 // pred_region
      %s275 = ssub.s32 256, 256
      %276 = vsyncadd [#allocation5], %s275
      %s277 = sshll.u32 [#allocation4], 4
      %s278 = int_to_ptr.vmem [resolvable:$true] %s277
      %283 = dma.vmem_to_hbm [thread:$0]  %s278, 256, %s6, [#allocation5], 128, 128, 8
    $region41: #{_gated_sae_pallas.1} parent=1 // pred_fallthru
      _
    // Predicated region
    $region42: #{_gated_sae_pallas.1} parent=1 // pred_check
      _
    $region43: #{_gated_sae_pallas.1} parent=1 // pred_check_branch
      %285 = sbr.rel (0) target = $region45
    $region44: #{_gated_sae_pallas.1} parent=1 // pred_region
      %286 = dma.done [#allocation3], 256
    $region45: #{_gated_sae_pallas.1} parent=1 // pred_fallthru
      _
    // Predicated region
    $region46: #{_gated_sae_pallas.1} parent=1 // pred_check
      _
    $region47: #{_gated_sae_pallas.1} parent=1 // pred_check_branch
      %288 = sbr.rel (0) target = $region49
    $region48: #{_gated_sae_pallas.1} parent=1 // pred_region
      %289 = dma.done [#allocation5], 256
    $region49: #{_gated_sae_pallas.1} parent=1 // pred_fallthru
      _
    %290 = vsyncpa [#allocation3], 1
    %291 = vsyncpa [#allocation5], 1

</llo_original>
